<compile_context>
chip_gen: v7x
topology: tpu7x:2x2x1
jax: 0.10.0
libtpu: 0.0.40
codegen_flags: <defaults>
</compile_context>

<pallas_src>
import jax
import jax.numpy as jnp
from jax.experimental import pallas as pl
from jax.experimental.pallas import tpu as pltpu

BN_EPS = 1e-5
LANE = 128


def _round_up(x, m):
    return (x + m - 1) // m * m


def _make_mlp_kernel(num_layers):
    """Builds a fused MLP kernel for a statically-known number of layers.

    Ref order (num_layers >= 2):
      x, w_0 .. w_{L-1}, gammas[L-1,Hp], betas[L-1,Hp], b_last[1,Op], out
    Ref order (num_layers == 1):
      x, w_0, b_last[1,Op], out
    """

    def kernel(*refs):
        x_ref = refs[0]
        out_ref = refs[-1]
        w_refs = refs[1:1 + num_layers]

        n = x_ref.shape[0]
        inv_n = jnp.float32(1.0 / n)

        h = x_ref[...]  # bf16, lane-padded

        if num_layers > 1:
            gamma_ref = refs[1 + num_layers]
            beta_ref = refs[2 + num_layers]
            b_last_ref = refs[3 + num_layers]

            for i in range(num_layers - 1):
                # Hidden linear on the MXU. Pre-BN bias is dropped: a constant
                # per-feature bias is exactly cancelled by the BN mean
                # subtraction below.
                z = jnp.dot(h, w_refs[i][...],
                            preferred_element_type=jnp.float32)

                # BatchNorm1d (training mode: batch stats, biased variance),
                # one-pass stats, affine folded into (1,H) scale/shift.
                mean = jnp.sum(z, axis=0, keepdims=True) * inv_n
                mean_sq = jnp.sum(z * z, axis=0, keepdims=True) * inv_n
                var = mean_sq - mean * mean
                scale = gamma_ref[i:i + 1, :] * jax.lax.rsqrt(var + BN_EPS)
                shift = beta_ref[i:i + 1, :] - mean * scale

                # Normalize + affine + ReLU: two full-tile VPU ops + max.
                h = jnp.maximum(z * scale + shift, 0.0).astype(jnp.bfloat16)
        else:
            b_last_ref = refs[2]

        # Final linear (bias kept, no BN / ReLU).
        out = jnp.dot(h, w_refs[-1][...], preferred_element_type=jnp.float32)
        out_ref[...] = (out + b_last_ref[...]).astype(out_ref.dtype)

    return kernel


def mlp_forward(x, weights, biases, gammas, betas):
    """Runs the fused MLP Pallas kernel.

    Args:
      x:       [N, input_dim] f32
      weights: list of (in_dim, out_dim) f32 arrays (pre-transposed), len == L
      biases:  list of (1, out_dim) f32 arrays,                      len == L
      gammas:  list of (1, hidden_dim) f32 arrays,                   len == L-1
      betas:   list of (1, hidden_dim) f32 arrays,                   len == L-1
    Returns:
      [N, output_dim] f32
    """
    num_layers = len(weights)
    n, in_dim = x.shape
    out_dim = weights[-1].shape[1]

    in_p = _round_up(in_dim, LANE)
    out_p = _round_up(out_dim, LANE)

    def pad2(a, rows, cols):
        return jnp.pad(a, ((0, rows - a.shape[0]), (0, cols - a.shape[1])))

    # Lane-pad x and cast matmul operands to bf16 (halves DMA, full-rate MXU).
    x_p = pad2(x, n, in_p).astype(jnp.bfloat16)

    w_p = []
    prev = in_p
    hid_p = None
    for i, w in enumerate(weights):
        dout = w.shape[1]
        dout_p = out_p if i == num_layers - 1 else _round_up(dout, LANE)
        if i < num_layers - 1:
            hid_p = dout_p
        w_p.append(pad2(w, prev, dout_p).astype(jnp.bfloat16))
        prev = dout_p

    args = [x_p] + w_p
    if num_layers > 1:
        # Stack the tiny per-layer BN vectors into one operand per kind.
        g_p = jnp.stack(
            [jnp.pad(g.reshape(-1), (0, hid_p - g.size)) for g in gammas]
        ).astype(jnp.float32)
        bt_p = jnp.stack(
            [jnp.pad(b.reshape(-1), (0, hid_p - b.size)) for b in betas]
        ).astype(jnp.float32)
        args += [g_p, bt_p]
    # Final bias, lane-padded, kept in f32.
    b_last = jnp.pad(
        biases[-1].reshape(1, -1), ((0, 0), (0, out_p - out_dim))
    ).astype(jnp.float32)
    args += [b_last]

    # Explicit VMEM budget (single block, no double-buffering): operands +
    # output + headroom, capped well below every generation's scoped limit.
    arg_bytes = sum(int(a.size) * a.dtype.itemsize for a in args)
    out_bytes = n * out_p * 4
    vmem_limit = min(32 << 20, max(8 << 20, 4 * (arg_bytes + out_bytes)))

    vmem_spec = pl.BlockSpec(memory_space=pltpu.MemorySpace.VMEM)
    out_padded = pl.pallas_call(
        _make_mlp_kernel(num_layers),
        out_shape=jax.ShapeDtypeStruct((n, out_p), jnp.float32),
        in_specs=[vmem_spec] * len(args),
        out_specs=vmem_spec,
        compiler_params=pltpu.CompilerParams(vmem_limit_bytes=vmem_limit),
    )(*args)

    return out_padded[:, :out_dim]


def make_params(key, num_layers, input_dim, hidden_dim, output_dim):
    """Deterministic synthetic parameters (shapes match the PyTorch module)."""
    weights, biases, gammas, betas = [], [], [], []
    if num_layers == 1:
        dims = [(input_dim, output_dim)]
    else:
        dims = [(input_dim, hidden_dim)]
        dims += [(hidden_dim, hidden_dim)] * (num_layers - 2)
        dims += [(hidden_dim, output_dim)]

    for i, (din, dout) in enumerate(dims):
        key, kw, kb = jax.random.split(key, 3)
        # nn.Linear weight is (out, in); stored transposed as (in, out).
        weights.append(0.1 * jax.random.normal(kw, (din, dout), jnp.float32))
        biases.append(0.1 * jax.random.normal(kb, (1, dout), jnp.float32))
        if num_layers > 1 and i < num_layers - 1:
            gammas.append(jnp.ones((1, dout), jnp.float32))  # BN default init
            betas.append(jnp.zeros((1, dout), jnp.float32))
    return weights, biases, gammas, betas


def mlp_reference(x, weights, biases, gammas, betas, matmul_dtype=jnp.float32):
    """Pure-JAX reference of the PyTorch forward (training-mode BN).

    `matmul_dtype=jnp.bfloat16` mirrors the kernel's matmul precision.
    """
    num_layers = len(weights)
    h = x
    for i in range(num_layers - 1):
        z = jnp.dot(h.astype(matmul_dtype), weights[i].astype(matmul_dtype),
                    preferred_element_type=jnp.float32) + biases[i]
        mean = jnp.mean(z, axis=0, keepdims=True)
        var = jnp.mean((z - mean) ** 2, axis=0, keepdims=True)
        h = jnp.maximum(
            (z - mean) * jax.lax.rsqrt(var + BN_EPS) * gammas[i] + betas[i], 0.0
        )
    return jnp.dot(h.astype(matmul_dtype), weights[-1].astype(matmul_dtype),
                   preferred_element_type=jnp.float32) + biases[-1]


if __name__ == "__main__":
    num_layers, input_dim, hidden_dim, output_dim = 3, 16, 32, 8
    batch = 8

    key = jax.random.PRNGKey(0)
    key, kx = jax.random.split(key)
    x = jax.random.normal(kx, (batch, input_dim), jnp.float32)

    weights, biases, gammas, betas = make_params(
        key, num_layers, input_dim, hidden_dim, output_dim
    )

    out = mlp_forward(x, weights, biases, gammas, betas)
    out = jax.block_until_ready(out)
    assert out.shape == (batch, output_dim)

    # Tight check vs a reference with matching bf16 matmul precision.
    ref_bf16 = mlp_reference(x, weights, biases, gammas, betas,
                             matmul_dtype=jnp.bfloat16)
    assert jnp.allclose(out, ref_bf16, atol=5e-3, rtol=5e-3), (
        "mismatch vs bf16-matmul reference")

    # Loose sanity check vs the exact f32 PyTorch-semantics reference.
    ref_f32 = mlp_reference(x, weights, biases, gammas, betas,
                            matmul_dtype=jnp.float32)
    assert jnp.allclose(out, ref_f32, atol=5e-2, rtol=5e-2), (
        "mismatch vs f32 reference")

    print("KERNEL_OK")
</pallas_src>

<mosaic_0001>
module attributes {stable_mosaic.version = 11 : i64} {
  func.func @kernel(%arg0: memref<8x128xbf16, #tpu.memory_space<vmem>>, %arg1: memref<128x128xbf16, #tpu.memory_space<vmem>>, %arg2: memref<128x128xbf16, #tpu.memory_space<vmem>>, %arg3: memref<128x128xbf16, #tpu.memory_space<vmem>>, %arg4: memref<2x128xf32, #tpu.memory_space<vmem>>, %arg5: memref<2x128xf32, #tpu.memory_space<vmem>>, %arg6: memref<1x128xf32, #tpu.memory_space<vmem>>, %arg7: memref<8x128xf32, #tpu.memory_space<vmem>>) attributes {dimension_semantics = [], scalar_prefetch = 0 : i64, scratch_operands = 0 : i64, tpu.core_type = #tpu.core_type<tc>} {
    %c0 = arith.constant 0 : index
    %c0_0 = arith.constant 0 : index
    %0 = vector.load %arg0[%c0, %c0_0] : memref<8x128xbf16, #tpu.memory_space<vmem>>, vector<8x128xbf16>
    %c0_1 = arith.constant 0 : index
    %c0_2 = arith.constant 0 : index
    %1 = vector.load %arg1[%c0_1, %c0_2] : memref<128x128xbf16, #tpu.memory_space<vmem>>, vector<128x128xbf16>
    %cst = arith.constant dense<0.000000e+00> : vector<8x128xf32>
    %2 = tpu.matmul %0, %1, %cst {dimension_numbers = #tpu.dot_dimension_numbers<[1], [0], [0], [1], [0, 0, 1, 1], [], []>} : vector<8x128xbf16>, vector<128x128xbf16>, vector<8x128xf32> -> vector<8x128xf32>
    %cst_3 = arith.constant dense<0.000000e+00> : vector<128xf32>
    %3 = vector.multi_reduction <add>, %2, %cst_3 [0] : vector<8x128xf32> to vector<128xf32>
    %4 = vector.shape_cast %3 : vector<128xf32> to vector<1x128xf32>
    %cst_4 = arith.constant 1.250000e-01 : f32
    %5 = vector.broadcast %cst_4 : f32 to vector<1x128xf32>
    %6 = arith.mulf %4, %5 : vector<1x128xf32>
    %7 = arith.mulf %2, %2 : vector<8x128xf32>
    %cst_5 = arith.constant dense<0.000000e+00> : vector<128xf32>
    %8 = vector.multi_reduction <add>, %7, %cst_5 [0] : vector<8x128xf32> to vector<128xf32>
    %9 = vector.shape_cast %8 : vector<128xf32> to vector<1x128xf32>
    %cst_6 = arith.constant 1.250000e-01 : f32
    %10 = vector.broadcast %cst_6 : f32 to vector<1x128xf32>
    %11 = arith.mulf %9, %10 : vector<1x128xf32>
    %12 = arith.mulf %6, %6 : vector<1x128xf32>
    %13 = arith.subf %11, %12 : vector<1x128xf32>
    %c0_7 = arith.constant 0 : index
    %c0_8 = arith.constant 0 : index
    %14 = vector.load %arg4[%c0_7, %c0_8] : memref<2x128xf32, #tpu.memory_space<vmem>>, vector<1x128xf32>
    %cst_9 = arith.constant 9.99999974E-6 : f32
    %15 = vector.broadcast %cst_9 : f32 to vector<1x128xf32>
    %16 = arith.addf %13, %15 : vector<1x128xf32>
    %17 = math.rsqrt %16 : vector<1x128xf32>
    %18 = arith.mulf %14, %17 : vector<1x128xf32>
    %c0_10 = arith.constant 0 : index
    %c0_11 = arith.constant 0 : index
    %19 = vector.load %arg5[%c0_10, %c0_11] : memref<2x128xf32, #tpu.memory_space<vmem>>, vector<1x128xf32>
    %20 = arith.mulf %6, %18 : vector<1x128xf32>
    %21 = arith.subf %19, %20 : vector<1x128xf32>
    %22 = vector.broadcast %18 : vector<1x128xf32> to vector<8x128xf32>
    %23 = arith.mulf %2, %22 : vector<8x128xf32>
    %24 = vector.broadcast %21 : vector<1x128xf32> to vector<8x128xf32>
    %25 = arith.addf %23, %24 : vector<8x128xf32>
    %cst_12 = arith.constant 0.000000e+00 : f32
    %26 = vector.broadcast %cst_12 : f32 to vector<8x128xf32>
    %27 = arith.maximumf %25, %26 : vector<8x128xf32>
    %28 = arith.truncf %27 : vector<8x128xf32> to vector<8x128xbf16>
    %c0_13 = arith.constant 0 : index
    %c0_14 = arith.constant 0 : index
    %29 = vector.load %arg2[%c0_13, %c0_14] : memref<128x128xbf16, #tpu.memory_space<vmem>>, vector<128x128xbf16>
    %cst_15 = arith.constant dense<0.000000e+00> : vector<8x128xf32>
    %30 = tpu.matmul %28, %29, %cst_15 {dimension_numbers = #tpu.dot_dimension_numbers<[1], [0], [0], [1], [0, 0, 1, 1], [], []>} : vector<8x128xbf16>, vector<128x128xbf16>, vector<8x128xf32> -> vector<8x128xf32>
    %cst_16 = arith.constant dense<0.000000e+00> : vector<128xf32>
    %31 = vector.multi_reduction <add>, %30, %cst_16 [0] : vector<8x128xf32> to vector<128xf32>
    %32 = vector.shape_cast %31 : vector<128xf32> to vector<1x128xf32>
    %cst_17 = arith.constant 1.250000e-01 : f32
    %33 = vector.broadcast %cst_17 : f32 to vector<1x128xf32>
    %34 = arith.mulf %32, %33 : vector<1x128xf32>
    %35 = arith.mulf %30, %30 : vector<8x128xf32>
    %cst_18 = arith.constant dense<0.000000e+00> : vector<128xf32>
    %36 = vector.multi_reduction <add>, %35, %cst_18 [0] : vector<8x128xf32> to vector<128xf32>
    %37 = vector.shape_cast %36 : vector<128xf32> to vector<1x128xf32>
    %cst_19 = arith.constant 1.250000e-01 : f32
    %38 = vector.broadcast %cst_19 : f32 to vector<1x128xf32>
    %39 = arith.mulf %37, %38 : vector<1x128xf32>
    %40 = arith.mulf %34, %34 : vector<1x128xf32>
    %41 = arith.subf %39, %40 : vector<1x128xf32>
    %c1 = arith.constant 1 : index
    %c0_20 = arith.constant 0 : index
    %42 = vector.load %arg4[%c1, %c0_20] : memref<2x128xf32, #tpu.memory_space<vmem>>, vector<1x128xf32>
    %cst_21 = arith.constant 9.99999974E-6 : f32
    %43 = vector.broadcast %cst_21 : f32 to vector<1x128xf32>
    %44 = arith.addf %41, %43 : vector<1x128xf32>
    %45 = math.rsqrt %44 : vector<1x128xf32>
    %46 = arith.mulf %42, %45 : vector<1x128xf32>
    %c1_22 = arith.constant 1 : index
    %c0_23 = arith.constant 0 : index
    %47 = vector.load %arg5[%c1_22, %c0_23] : memref<2x128xf32, #tpu.memory_space<vmem>>, vector<1x128xf32>
    %48 = arith.mulf %34, %46 : vector<1x128xf32>
    %49 = arith.subf %47, %48 : vector<1x128xf32>
    %50 = vector.broadcast %46 : vector<1x128xf32> to vector<8x128xf32>
    %51 = arith.mulf %30, %50 : vector<8x128xf32>
    %52 = vector.broadcast %49 : vector<1x128xf32> to vector<8x128xf32>
    %53 = arith.addf %51, %52 : vector<8x128xf32>
    %cst_24 = arith.constant 0.000000e+00 : f32
    %54 = vector.broadcast %cst_24 : f32 to vector<8x128xf32>
    %55 = arith.maximumf %53, %54 : vector<8x128xf32>
    %56 = arith.truncf %55 : vector<8x128xf32> to vector<8x128xbf16>
    %c0_25 = arith.constant 0 : index
    %c0_26 = arith.constant 0 : index
    %57 = vector.load %arg3[%c0_25, %c0_26] : memref<128x128xbf16, #tpu.memory_space<vmem>>, vector<128x128xbf16>
    %cst_27 = arith.constant dense<0.000000e+00> : vector<8x128xf32>
    %58 = tpu.matmul %56, %57, %cst_27 {dimension_numbers = #tpu.dot_dimension_numbers<[1], [0], [0], [1], [0, 0, 1, 1], [], []>} : vector<8x128xbf16>, vector<128x128xbf16>, vector<8x128xf32> -> vector<8x128xf32>
    %c0_28 = arith.constant 0 : index
    %c0_29 = arith.constant 0 : index
    %59 = vector.load %arg6[%c0_28, %c0_29] : memref<1x128xf32, #tpu.memory_space<vmem>>, vector<1x128xf32>
    %60 = vector.broadcast %59 : vector<1x128xf32> to vector<8x128xf32>
    %61 = arith.addf %58, %60 : vector<8x128xf32>
    %c0_30 = arith.constant 0 : index
    %c0_31 = arith.constant 0 : index
    %62 = vector.load %arg7[%c0_30, %c0_31] : memref<8x128xf32, #tpu.memory_space<vmem>>, vector<8x128xf32>
    tpu.vector_store %arg7[%c0_30, %c0_31], %61 {strides = array<i32>} : memref<8x128xf32, #tpu.memory_space<vmem>>, vector<8x128xf32>,
    return
  }
}

</mosaic_0001>

<llo_original>
// kernel: tpu_custom_call.1
$region0: #{tpu_custom_call.1}
  #allocation0 [shape = 'u32[]', space=smem, size = 0x4, offset = 0x4, fixed_abs, tag = 'smem constant byte address 0x4 - core index']
  #allocation1 [shape = 'u32[144,128]{1,0:T(1,128)}', space=vmem, size = 0x12000, scoped, tag = 'internal scratch']
  %s0 = inlined_call_operand.hbm [shape: bf16[8,128], index: 0, kind: input, shape index: {}]
  %s1 = inlined_call_operand.hbm [shape: bf16[128,128], index: 1, kind: input, shape index: {}]
  %s2 = inlined_call_operand.hbm [shape: bf16[128,128], index: 2, kind: input, shape index: {}]
  %s3 = inlined_call_operand.hbm [shape: bf16[128,128], index: 3, kind: input, shape index: {}]
  %s4 = inlined_call_operand.vmem [shape: f32[2,128], index: 4, kind: input, shape index: {}]
  %s5 = inlined_call_operand.vmem [shape: f32[2,128], index: 5, kind: input, shape index: {}]
  %s6 = inlined_call_operand.vmem [shape: f32[1,128], index: 6, kind: input, shape index: {}]
  %s7 = inlined_call_operand.hbm [shape: f32[8,128], index: 7, kind: output, shape index: {}]
  %s8 = sld [smem:[#allocation0]]
  $region54: #{tpu_custom_call.1} parent=0
    _
  %s10 = ssub.s32 1, %s8
  %s11 = scalar_select 0, %s10, %s8
  $region1: #{tpu_custom_call.1} parent=0
    #allocation2 [shape = 'u8[2048]{0}', space=vmem, size = 0x800, scoped, tag = 'input window, operand 0, single buffered']
    #allocation3 [shape = 's32[1]{0}', space=sflag, size = 0x4, scoped, tag = 'scoped memory for tpu_custom_call.1']
    #allocation4 [shape = 's32[1]{0}', space=sflag, size = 0x4, scoped, tag = 'scoped memory for tpu_custom_call.1']
    #allocation5 [shape = 'u8[32768]{0}', space=vmem, size = 0x8000, scoped, tag = 'input window, operand 1, single buffered']
    #allocation6 [shape = 's32[1]{0}', space=sflag, size = 0x4, scoped, tag = 'scoped memory for tpu_custom_call.1']
    #allocation7 [shape = 'u8[32768]{0}', space=vmem, size = 0x8000, scoped, tag = 'input window, operand 2, single buffered']
    #allocation8 [shape = 'u8[32768]{0}', space=vmem, size = 0x8000, scoped, tag = 'input window, operand 3, single buffered']
    #allocation9 [shape = 's32[1]{0}', space=sflag, size = 0x4, scoped, tag = 'scoped memory for tpu_custom_call.1']
    #allocation10 [shape = 'u8[4096]{0}', space=vmem, size = 0x1000, scoped, tag = 'output window, operand 0, single buffered']
    %12 = vsyncpa [#allocation3], 0
    %13 = vsyncpa [#allocation6], 0
    %14 = vsyncpa [#allocation9], 0
    %15 = vsyncpa [#allocation4], 0
    // Predicated region
    $region2: #{tpu_custom_call.1} parent=1 // pred_check
      _
    $region3: #{tpu_custom_call.1} parent=1 // pred_check_branch
      %17 = sbr.rel (0) target = $region5
    $region4: #{tpu_custom_call.1} parent=1 // pred_region
      %s19 = ssub.s32 64, 64
      %20 = vsyncadd [#allocation3], %s19
      %s22 = sshll.u32 [#allocation2], 4
      %s23 = int_to_ptr.vmem [resolvable:$true] %s22
      %25 = dma.hbm_to_vmem [thread:$0]  %s0, 64, %s23, [#allocation3]
    $region5: #{tpu_custom_call.1} parent=1 // pred_fallthru
      _
    // Predicated region
    $region6: #{tpu_custom_call.1} parent=1 // pred_check
      _
    $region7: #{tpu_custom_call.1} parent=1 // pred_check_branch
      %27 = sbr.rel (0) target = $region9
    $region8: #{tpu_custom_call.1} parent=1 // pred_region
      %s29 = ssub.s32 1024, 1024
      %30 = vsyncadd [#allocation6], %s29
      %s31 = sshll.u32 [#allocation5], 4
      %s32 = int_to_ptr.vmem [resolvable:$true] %s31
      %37 = dma.hbm_to_vmem [thread:$0]  %s1, 1024, %s32, [#allocation6], 64, 64, 4
    $region9: #{tpu_custom_call.1} parent=1 // pred_fallthru
      _
    // Predicated region
    $region10: #{tpu_custom_call.1} parent=1 // pred_check
      _
    $region11: #{tpu_custom_call.1} parent=1 // pred_check_branch
      %39 = sbr.rel (0) target = $region13
    $region12: #{tpu_custom_call.1} parent=1 // pred_region
      %s41 = ssub.s32 1024, 1024
      %42 = vsyncadd [#allocation6], %s41
      %s43 = sshll.u32 [#allocation7], 4
      %s44 = int_to_ptr.vmem [resolvable:$true] %s43
      %49 = dma.hbm_to_vmem [thread:$0]  %s2, 1024, %s44, [#allocation6], 64, 64, 4
    $region13: #{tpu_custom_call.1} parent=1 // pred_fallthru
      _
    // Predicated region
    $region14: #{tpu_custom_call.1} parent=1 // pred_check
      _
    $region15: #{tpu_custom_call.1} parent=1 // pred_check_branch
      %51 = sbr.rel (0) target = $region17
    $region16: #{tpu_custom_call.1} parent=1 // pred_region
      %s53 = ssub.s32 1024, 1024
      %54 = vsyncadd [#allocation9], %s53
      %s55 = sshll.u32 [#allocation8], 4
      %s56 = int_to_ptr.vmem [resolvable:$true] %s55
      %61 = dma.hbm_to_vmem [thread:$0]  %s3, 1024, %s56, [#allocation9], 64, 64, 4
    $region17: #{tpu_custom_call.1} parent=1 // pred_fallthru
      _
    // Predicated region
    $region18: #{tpu_custom_call.1} parent=1 // pred_check
      _
    $region19: #{tpu_custom_call.1} parent=1 // pred_check_branch
      %63 = sbr.rel (0) target = $region21
    $region20: #{tpu_custom_call.1} parent=1 // pred_region
      _
    $region21: #{tpu_custom_call.1} parent=1 // pred_fallthru
      _
    // Predicated region
    $region22: #{tpu_custom_call.1} parent=1 // pred_check
      _
    $region23: #{tpu_custom_call.1} parent=1 // pred_check_branch
      %65 = sbr.rel (0) target = $region25
    $region24: #{tpu_custom_call.1} parent=1 // pred_region
      _
    $region25: #{tpu_custom_call.1} parent=1 // pred_fallthru
      _
    // Predicated region
    $region26: #{tpu_custom_call.1} parent=1 // pred_check
      _
    $region27: #{tpu_custom_call.1} parent=1 // pred_check_branch
      %67 = sbr.rel (0) target = $region29
    $region28: #{tpu_custom_call.1} parent=1 // pred_region
      _
    $region29: #{tpu_custom_call.1} parent=1 // pred_fallthru
      _
    // Predicated region
    $region30: #{tpu_custom_call.1} parent=1 // pred_check
      _
    $region31: #{tpu_custom_call.1} parent=1 // pred_check_branch
      %69 = sbr.rel (0) target = $region33
    $region32: #{tpu_custom_call.1} parent=1 // pred_region
      %70 = dma.done [#allocation3], 64
    $region33: #{tpu_custom_call.1} parent=1 // pred_fallthru
      _
    // Predicated region
    $region34: #{tpu_custom_call.1} parent=1 // pred_check
      _
    $region35: #{tpu_custom_call.1} parent=1 // pred_check_branch
      %72 = sbr.rel (0) target = $region37
    $region36: #{tpu_custom_call.1} parent=1 // pred_region
      %73 = dma.done [#allocation6], 1024
    $region37: #{tpu_custom_call.1} parent=1 // pred_fallthru
      _
    // Predicated region
    $region38: #{tpu_custom_call.1} parent=1 // pred_check
      _
    $region39: #{tpu_custom_call.1} parent=1 // pred_check_branch
      %75 = sbr.rel (0) target = $region41
    $region40: #{tpu_custom_call.1} parent=1 // pred_region
      %76 = dma.done [#allocation6], 1024
    $region41: #{tpu_custom_call.1} parent=1 // pred_fallthru
      _
    // Predicated region
    $region42: #{tpu_custom_call.1} parent=1 // pred_check
      _
    $region43: #{tpu_custom_call.1} parent=1 // pred_check_branch
      %78 = sbr.rel (0) target = $region45
    $region44: #{tpu_custom_call.1} parent=1 // pred_region
      %79 = dma.done [#allocation9], 1024
    $region45: #{tpu_custom_call.1} parent=1 // pred_fallthru
      _
    %v81 = vld [vmem:[#allocation2] sm:$0xf]
    %v82 = vld [vmem:[#allocation5] sm:$0xf]
    %v83 = vld [vmem:[#allocation5 + $0x4] sm:$0xf]
    %v84 = vld [vmem:[#allocation5 + $0x8] sm:$0xf]
    %v85 = vld [vmem:[#allocation5 + $0xc] sm:$0xf]
    %v86 = vld [vmem:[#allocation5 + $0x10] sm:$0xf]
    %v87 = vld [vmem:[#allocation5 + $0x14] sm:$0xf]
    %v88 = vld [vmem:[#allocation5 + $0x18] sm:$0xf]
    %v89 = vld [vmem:[#allocation5 + $0x1c] sm:$0xf]
    %v90 = vld [vmem:[#allocation5 + $0x20] sm:$0xf]
    %v91 = vld [vmem:[#allocation5 + $0x24] sm:$0xf]
    %v92 = vld [vmem:[#allocation5 + $0x28] sm:$0xf]
    %v93 = vld [vmem:[#allocation5 + $0x2c] sm:$0xf]
    %v94 = vld [vmem:[#allocation5 + $0x30] sm:$0xf]
    %v95 = vld [vmem:[#allocation5 + $0x34] sm:$0xf]
    %v96 = vld [vmem:[#allocation5 + $0x38] sm:$0xf]
    %v97 = vld [vmem:[#allocation5 + $0x3c] sm:$0xf]
    %v114 = vunpack.c.l.b16 %v82
    %v115 = vunpack.c.l.b16 %v83
    %v116 = vunpack.c.l.b16 %v84
    %v117 = vunpack.c.l.b16 %v85
    %v118 = vunpack.c.l.b16 %v86
    %v119 = vunpack.c.l.b16 %v87
    %v120 = vunpack.c.l.b16 %v88
    %v121 = vunpack.c.l.b16 %v89
    %v122 = vunpack.c.l.b16 %v90
    %v123 = vunpack.c.l.b16 %v91
    %v124 = vunpack.c.l.b16 %v92
    %v125 = vunpack.c.l.b16 %v93
    %v126 = vunpack.c.l.b16 %v94
    %v127 = vunpack.c.l.b16 %v95
    %v128 = vunpack.c.l.b16 %v96
    %v129 = vunpack.c.l.b16 %v97
    %v130 = vpack.c.b16 %v115, %v114
    %v131 = vpack.c.b16 %v117, %v116
    %v132 = vpack.c.b16 %v119, %v118
    %v133 = vpack.c.b16 %v121, %v120
    %v134 = vpack.c.b16 %v123, %v122
    %v135 = vpack.c.b16 %v125, %v124
    %v136 = vpack.c.b16 %v127, %v126
    %v137 = vpack.c.b16 %v129, %v128
    %146 = vmatprep.subr.bf16.mxu0 0
    %147 = vmatpush1.bf16.msra.mxu0 %v130
    %148 = vmatprep.subr.bf16.mxu0 0
    %149 = vmatpush1.bf16.msra.mxu0 %v131
    %150 = vmatprep.subr.bf16.mxu0 0
    %151 = vmatpush1.bf16.msra.mxu0 %v132
    %152 = vmatprep.subr.bf16.mxu0 0
    %153 = vmatpush1.bf16.msra.mxu0 %v133
    %154 = vmatprep.subr.bf16.mxu0 0
    %155 = vmatpush1.bf16.msra.mxu0 %v134
    %156 = vmatprep.subr.bf16.mxu0 0
    %157 = vmatpush1.bf16.msra.mxu0 %v135
    %158 = vmatprep.subr.bf16.mxu0 0
    %159 = vmatpush1.bf16.msra.mxu0 %v136
    %160 = vmatprep.subr.bf16.mxu0 0
    %161 = vmatpush1.bf16.msra.mxu0 %v137
    %162 = vmatprep.subr.bf16.mxu0 0
    %163 = vmatpush1.bf16.msra.mxu0 0
    %164 = vmatprep.subr.bf16.mxu0 0
    %165 = vmatpush1.bf16.msra.mxu0 0
    %166 = vmatprep.subr.bf16.mxu0 0
    %167 = vmatpush1.bf16.msra.mxu0 0
    %168 = vmatprep.subr.bf16.mxu0 0
    %169 = vmatpush1.bf16.msra.mxu0 0
    %170 = vmatprep.subr.bf16.mxu0 0
    %171 = vmatpush1.bf16.msra.mxu0 0
    %172 = vmatprep.subr.bf16.mxu0 0
    %173 = vmatpush1.bf16.msra.mxu0 0
    %174 = vmatprep.subr.bf16.mxu0 0
    %175 = vmatpush1.bf16.msra.mxu0 0
    %176 = vmatprep.subr.bf16.mxu0 0
    %177 = vmatpush1.bf16.msra.mxu0 0
    %178 = vmatprep.mubr.bf16.mxu0 0
    %179 = vmatmul.mubr.bf16.gmra.mrb[0].mxu0 %v81
    %v180 = vpop.f32.mrb[0].mxu0
    %v181 = vadd.f32 0.0, %v180
    %v182 = vpop.f32.mrb[0].mxu0
    %v183 = vpop.f32.mrb[0].mxu0
    %v184 = vpop.f32.mrb[0].mxu0
    %185 = vdwg.mxu0
    %v186 = vrot.slane %v181, 4
    %v187 = vadd.f32 %v181, %v186
    %v188 = vrot.slane %v187, 2
    %v189 = vadd.f32 %v187, %v188
    %v190 = vrot.slane %v189, 1
    %v191 = vadd.f32 %v189, %v190
    %v192 = vmul.f32 %v191, 0.125
    %v193 = vmul.f32 %v181, %v181
    %v194 = vrot.slane %v193, 4
    %v195 = vadd.f32 %v193, %v194
    %v196 = vrot.slane %v195, 2
    %v197 = vadd.f32 %v195, %v196
    %v198 = vrot.slane %v197, 1
    %v199 = vadd.f32 %v197, %v198
    %v200 = vmul.f32 %v199, 0.125
    %v201 = vmul.f32 %v192, %v192
    %v202 = vsub.f32 %v200, %v201
    %v203 = vld [vmem:[%s4] sm:$0x1]
    %v204 = vadd.f32 %v202, 1e-05
    %v205 = vrsqrt.pop %v204
    %v206 = vmul.f32 %v203, %v205
    %v207 = vld [vmem:[%s5] sm:$0x1]
    %v208 = vmul.f32 %v192, %v206
    %v209 = vsub.f32 %v207, %v208
    %v210 = vlaneseq
    %v211 = vshrl.u32 %v210, 7
    %v212 = vsub.s32 0, %v211
    %v213 = vrot.slane %v206, %v212
    %v214 = vmul.f32 %v181, %v213
    %v215 = vlaneseq
    %v216 = vshrl.u32 %v215, 7
    %v217 = vsub.s32 0, %v216
    %v218 = vrot.slane %v209, %v217
    %v219 = vadd.f32 %v214, %v218
    %v220 = vmax.f32 %v219, 0.0
    %v221 = vpack.c.bf16 %v220, %v220
    %v222 = vld [vmem:[#allocation7] sm:$0xf]
    %v223 = vld [vmem:[#allocation7 + $0x4] sm:$0xf]
    %v224 = vld [vmem:[#allocation7 + $0x8] sm:$0xf]
    %v225 = vld [vmem:[#allocation7 + $0xc] sm:$0xf]
    %v226 = vld [vmem:[#allocation7 + $0x10] sm:$0xf]
    %v227 = vld [vmem:[#allocation7 + $0x14] sm:$0xf]
    %v228 = vld [vmem:[#allocation7 + $0x18] sm:$0xf]
    %v229 = vld [vmem:[#allocation7 + $0x1c] sm:$0xf]
    %v230 = vld [vmem:[#allocation7 + $0x20] sm:$0xf]
    %v231 = vld [vmem:[#allocation7 + $0x24] sm:$0xf]
    %v232 = vld [vmem:[#allocation7 + $0x28] sm:$0xf]
    %v233 = vld [vmem:[#allocation7 + $0x2c] sm:$0xf]
    %v234 = vld [vmem:[#allocation7 + $0x30] sm:$0xf]
    %v235 = vld [vmem:[#allocation7 + $0x34] sm:$0xf]
    %v236 = vld [vmem:[#allocation7 + $0x38] sm:$0xf]
    %v237 = vld [vmem:[#allocation7 + $0x3c] sm:$0xf]
    %v254 = vunpack.c.l.b16 %v222
    %v255 = vunpack.c.l.b16 %v223
    %v256 = vunpack.c.l.b16 %v224
    %v257 = vunpack.c.l.b16 %v225
    %v258 = vunpack.c.l.b16 %v226
    %v259 = vunpack.c.l.b16 %v227
    %v260 = vunpack.c.l.b16 %v228
    %v261 = vunpack.c.l.b16 %v229
    %v262 = vunpack.c.l.b16 %v230
    %v263 = vunpack.c.l.b16 %v231
    %v264 = vunpack.c.l.b16 %v232
    %v265 = vunpack.c.l.b16 %v233
    %v266 = vunpack.c.l.b16 %v234
    %v267 = vunpack.c.l.b16 %v235
    %v268 = vunpack.c.l.b16 %v236
    %v269 = vunpack.c.l.b16 %v237
    %v270 = vpack.c.b16 %v255, %v254
    %v271 = vpack.c.b16 %v257, %v256
    %v272 = vpack.c.b16 %v259, %v258
    %v273 = vpack.c.b16 %v261, %v260
    %v274 = vpack.c.b16 %v263, %v262
    %v275 = vpack.c.b16 %v265, %v264
    %v276 = vpack.c.b16 %v267, %v266
    %v277 = vpack.c.b16 %v269, %v268
    %286 = vmatprep.subr.bf16.mxu0 0
    %287 = vmatpush1.bf16.msra.mxu0 %v270
    %288 = vmatprep.subr.bf16.mxu0 0
    %289 = vmatpush1.bf16.msra.mxu0 %v271
    %290 = vmatprep.subr.bf16.mxu0 0
    %291 = vmatpush1.bf16.msra.mxu0 %v272
    %292 = vmatprep.subr.bf16.mxu0 0
    %293 = vmatpush1.bf16.msra.mxu0 %v273
    %294 = vmatprep.subr.bf16.mxu0 0
    %295 = vmatpush1.bf16.msra.mxu0 %v274
    %296 = vmatprep.subr.bf16.mxu0 0
    %297 = vmatpush1.bf16.msra.mxu0 %v275
    %298 = vmatprep.subr.bf16.mxu0 0
    %299 = vmatpush1.bf16.msra.mxu0 %v276
    %300 = vmatprep.subr.bf16.mxu0 0
    %301 = vmatpush1.bf16.msra.mxu0 %v277
    %302 = vmatprep.subr.bf16.mxu0 0
    %303 = vmatpush1.bf16.msra.mxu0 0
    %304 = vmatprep.subr.bf16.mxu0 0
    %305 = vmatpush1.bf16.msra.mxu0 0
    %306 = vmatprep.subr.bf16.mxu0 0
    %307 = vmatpush1.bf16.msra.mxu0 0
    %308 = vmatprep.subr.bf16.mxu0 0
    %309 = vmatpush1.bf16.msra.mxu0 0
    %310 = vmatprep.subr.bf16.mxu0 0
    %311 = vmatpush1.bf16.msra.mxu0 0
    %312 = vmatprep.subr.bf16.mxu0 0
    %313 = vmatpush1.bf16.msra.mxu0 0
    %314 = vmatprep.subr.bf16.mxu0 0
    %315 = vmatpush1.bf16.msra.mxu0 0
    %316 = vmatprep.subr.bf16.mxu0 0
    %317 = vmatpush1.bf16.msra.mxu0 0
    %318 = vmatprep.mubr.bf16.mxu0 0
    %319 = vmatmul.mubr.bf16.gmra.mrb[0].mxu0 %v221
    %v320 = vpop.f32.mrb[0].mxu0
    %v321 = vadd.f32 0.0, %v320
    %v322 = vpop.f32.mrb[0].mxu0
    %v323 = vpop.f32.mrb[0].mxu0
    %v324 = vpop.f32.mrb[0].mxu0
    %325 = vdwg.mxu0
    %v326 = vrot.slane %v321, 4
    %v327 = vadd.f32 %v321, %v326
    %v328 = vrot.slane %v327, 2
    %v329 = vadd.f32 %v327, %v328
    %v330 = vrot.slane %v329, 1
    %v331 = vadd.f32 %v329, %v330
    %v332 = vmul.f32 %v331, 0.125
    %v333 = vmul.f32 %v321, %v321
    %v334 = vrot.slane %v333, 4
    %v335 = vadd.f32 %v333, %v334
    %v336 = vrot.slane %v335, 2
    %v337 = vadd.f32 %v335, %v336
    %v338 = vrot.slane %v337, 1
    %v339 = vadd.f32 %v337, %v338
    %v340 = vmul.f32 %v339, 0.125
    %v341 = vmul.f32 %v332, %v332
    %v342 = vsub.f32 %v340, %v341
    %v343 = vld [vmem:[%s4 + $0x1] sm:$0x1]
    %v344 = vadd.f32 %v342, 1e-05
    %v345 = vrsqrt.pop %v344
    %v346 = vmul.f32 %v343, %v345
    %v347 = vld [vmem:[%s5 + $0x1] sm:$0x1]
    %v348 = vmul.f32 %v332, %v346
    %v349 = vsub.f32 %v347, %v348
    %v350 = vlaneseq
    %v351 = vshrl.u32 %v350, 7
    %v352 = vsub.s32 0, %v351
    %v353 = vrot.slane %v346, %v352
    %v354 = vmul.f32 %v321, %v353
    %v355 = vlaneseq
    %v356 = vshrl.u32 %v355, 7
    %v357 = vsub.s32 0, %v356
    %v358 = vrot.slane %v349, %v357
    %v359 = vadd.f32 %v354, %v358
    %v360 = vmax.f32 %v359, 0.0
    %v361 = vpack.c.bf16 %v360, %v360
    %v362 = vld [vmem:[#allocation8] sm:$0xf]
    %v363 = vld [vmem:[#allocation8 + $0x4] sm:$0xf]
    %v364 = vld [vmem:[#allocation8 + $0x8] sm:$0xf]
    %v365 = vld [vmem:[#allocation8 + $0xc] sm:$0xf]
    %v366 = vld [vmem:[#allocation8 + $0x10] sm:$0xf]
    %v367 = vld [vmem:[#allocation8 + $0x14] sm:$0xf]
    %v368 = vld [vmem:[#allocation8 + $0x18] sm:$0xf]
    %v369 = vld [vmem:[#allocation8 + $0x1c] sm:$0xf]
    %v370 = vld [vmem:[#allocation8 + $0x20] sm:$0xf]
    %v371 = vld [vmem:[#allocation8 + $0x24] sm:$0xf]
    %v372 = vld [vmem:[#allocation8 + $0x28] sm:$0xf]
    %v373 = vld [vmem:[#allocation8 + $0x2c] sm:$0xf]
    %v374 = vld [vmem:[#allocation8 + $0x30] sm:$0xf]
    %v375 = vld [vmem:[#allocation8 + $0x34] sm:$0xf]
    %v376 = vld [vmem:[#allocation8 + $0x38] sm:$0xf]
    %v377 = vld [vmem:[#allocation8 + $0x3c] sm:$0xf]
    %v378 = vld [vmem:[%s6] sm:$0x1]
    %v380 = vlaneseq
    %v381 = vshrl.u32 %v380, 7
    %v382 = vsub.s32 0, %v381
    %v383 = vrot.slane %v378, %v382
    %v401 = vunpack.c.l.b16 %v362
    %v402 = vunpack.c.l.b16 %v363
    %v403 = vunpack.c.l.b16 %v364
    %v404 = vunpack.c.l.b16 %v365
    %v405 = vunpack.c.l.b16 %v366
    %v406 = vunpack.c.l.b16 %v367
    %v407 = vunpack.c.l.b16 %v368
    %v408 = vunpack.c.l.b16 %v369
    %v409 = vunpack.c.l.b16 %v370
    %v410 = vunpack.c.l.b16 %v371
    %v411 = vunpack.c.l.b16 %v372
    %v412 = vunpack.c.l.b16 %v373
    %v413 = vunpack.c.l.b16 %v374
    %v414 = vunpack.c.l.b16 %v375
    %v415 = vunpack.c.l.b16 %v376
    %v416 = vunpack.c.l.b16 %v377
    %v417 = vpack.c.b16 %v402, %v401
    %v418 = vpack.c.b16 %v404, %v403
    %v419 = vpack.c.b16 %v406, %v405
    %v420 = vpack.c.b16 %v408, %v407
    %v421 = vpack.c.b16 %v410, %v409
    %v422 = vpack.c.b16 %v412, %v411
    %v423 = vpack.c.b16 %v414, %v413
    %v424 = vpack.c.b16 %v416, %v415
    %433 = vmatprep.subr.bf16.mxu0 0
    %434 = vmatpush1.bf16.msra.mxu0 %v417
    %435 = vmatprep.subr.bf16.mxu0 0
    %436 = vmatpush1.bf16.msra.mxu0 %v418
    %437 = vmatprep.subr.bf16.mxu0 0
    %438 = vmatpush1.bf16.msra.mxu0 %v419
    %439 = vmatprep.subr.bf16.mxu0 0
    %440 = vmatpush1.bf16.msra.mxu0 %v420
    %441 = vmatprep.subr.bf16.mxu0 0
    %442 = vmatpush1.bf16.msra.mxu0 %v421
    %443 = vmatprep.subr.bf16.mxu0 0
    %444 = vmatpush1.bf16.msra.mxu0 %v422
    %445 = vmatprep.subr.bf16.mxu0 0
    %446 = vmatpush1.bf16.msra.mxu0 %v423
    %447 = vmatprep.subr.bf16.mxu0 0
    %448 = vmatpush1.bf16.msra.mxu0 %v424
    %449 = vmatprep.subr.bf16.mxu0 0
    %450 = vmatpush1.bf16.msra.mxu0 0
    %451 = vmatprep.subr.bf16.mxu0 0
    %452 = vmatpush1.bf16.msra.mxu0 0
    %453 = vmatprep.subr.bf16.mxu0 0
    %454 = vmatpush1.bf16.msra.mxu0 0
    %455 = vmatprep.subr.bf16.mxu0 0
    %456 = vmatpush1.bf16.msra.mxu0 0
    %457 = vmatprep.subr.bf16.mxu0 0
    %458 = vmatpush1.bf16.msra.mxu0 0
    %459 = vmatprep.subr.bf16.mxu0 0
    %460 = vmatpush1.bf16.msra.mxu0 0
    %461 = vmatprep.subr.bf16.mxu0 0
    %462 = vmatpush1.bf16.msra.mxu0 0
    %463 = vmatprep.subr.bf16.mxu0 0
    %464 = vmatpush1.bf16.msra.mxu0 0
    %465 = vmatprep.mubr.bf16.mxu0 0
    %466 = vmatmul.mubr.bf16.gmra.mrb[0].mxu0 %v361
    %v467 = vpop.f32.mrb[0].mxu0
    %v468 = vadd.f32 %v383, %v467
    %v469 = vpop.f32.mrb[0].mxu0
    %v470 = vpop.f32.mrb[0].mxu0
    %v471 = vpop.f32.mrb[0].mxu0
    %472 = vdwg.mxu0
    %473 = vst [vmem:[#allocation10] sm:$0xff] %v468
    // Predicated region
    $region46: #{tpu_custom_call.1} parent=1 // pred_check
      _
    $region47: #{tpu_custom_call.1} parent=1 // pred_check_branch
      %475 = sbr.rel (0) target = $region49
    $region48: #{tpu_custom_call.1} parent=1 // pred_region
      %s477 = ssub.s32 128, 128
      %478 = vsyncadd [#allocation4], %s477
      %s480 = sshll.u32 [#allocation10], 4
      %s481 = int_to_ptr.vmem [resolvable:$true] %s480
      %483 = dma.vmem_to_hbm [thread:$0]  %s481, 128, %s7, [#allocation4]
    $region49: #{tpu_custom_call.1} parent=1 // pred_fallthru
      _
    // Predicated region
    $region50: #{tpu_custom_call.1} parent=1 // pred_check
      _
    $region51: #{tpu_custom_call.1} parent=1 // pred_check_branch
      %485 = sbr.rel (0) target = $region53
    $region52: #{tpu_custom_call.1} parent=1 // pred_region
      %486 = dma.done [#allocation4], 128
    $region53: #{tpu_custom_call.1} parent=1 // pred_fallthru
      _
    %487 = vsyncpa [#allocation3], 1
    %488 = vsyncpa [#allocation6], 1
    %489 = vsyncpa [#allocation9], 1
    %490 = vsyncpa [#allocation4], 1

</llo_original>
